<compile_context>
chip_gen: v7x
topology: tpu7x:2x2x1
jax: 0.10.0
libtpu: 0.0.40
codegen_flags: <defaults>
</compile_context>

<pallas_src>
import functools

import jax
import jax.numpy as jnp
import numpy as np
from jax.experimental import pallas as pl
from jax.experimental.pallas import tpu as pltpu

_LANE = 128


def _round_up(x, m):
    return (x + m - 1) // m * m


def fm_kernel(slab_ref, out_ref, *, num_fields, embedding_dim):
    """FM hot path for one batch tile.

    slab_ref : (TB, F*(D+1)) param_dtype -- per example, F contiguous chunks
               of [v_{x_f, 0..D-1}, w_{x_f}] (factors + first-order weight).
    out_ref  : (TB, 1) f32 -- linear + pairwise interaction (bias added in
               the wrapper).
    """
    D = embedding_dim
    W = D + 1
    acc = None   # (TB, D+1) f32 : sum_f [v_f, w_f]
    ssq = None   # (TB, 1)   f32 : sum_f sum_d v_{f,d}^2
    # F is small and static: an unrolled Python loop keeps every slice static
    # and the f32 working set at ~(D+1) columns per step (no full-tile f32).
    for f in range(num_fields):
        chunk = slab_ref[:, f * W:(f + 1) * W].astype(jnp.float32)   # (TB, D+1)
        acc = chunk if acc is None else acc + chunk
        sq = jnp.sum(chunk[:, :D] * chunk[:, :D], axis=1, keepdims=True)
        ssq = sq if ssq is None else ssq + sq

    linear_part = acc[:, D:]                                          # (TB, 1)
    square_of_sum = jnp.sum(acc[:, :D] * acc[:, :D], axis=1, keepdims=True)
    out_ref[...] = linear_part + 0.5 * (square_of_sum - ssq)


def _vmem_capacity_bytes():
    """Per-TensorCore VMEM capacity.

    Conservative 64 MiB (v7x) by default; the 128 MiB parts (v5e / v6e) are
    detected from the device kind.  (pltpu.get_tpu_info() could be used where
    its per-core VMEM field is available.)
    """
    try:
        kind = jax.devices()[0].device_kind.lower()
    except Exception:
        return 64 * 1024 * 1024
    if ("v5 lite" in kind) or ("v5e" in kind) or ("v6" in kind):
        return 128 * 1024 * 1024
    return 64 * 1024 * 1024


def _choose_batch_tile(batch, slab_width, in_itemsize):
    """Pick (TB, vmem_limit_bytes) from an explicit per-row VMEM budget.

    Accounts for the double-buffered input slab (lane-padded), the
    double-buffered lane-padded (TB, 1) f32 output block, and a generous
    allowance for the kernel's f32 accumulators / temporaries.
    """
    cap = _vmem_capacity_bytes()
    vmem_limit = min(3 * cap // 4, 96 * 1024 * 1024)     # 48 MiB v7x, 96 MiB v5e/v6e
    budget = vmem_limit - 6 * 1024 * 1024

    lanes_in = _round_up(slab_width, _LANE)
    per_row = 2 * lanes_in * in_itemsize                 # double-buffered input slab
    per_row += 2 * _LANE * 4                             # double-buffered (TB,1) f32 out
    per_row += 12 * _LANE * 4                            # f32 accumulators / temps

    max_rows = max(_LANE, budget // per_row // _LANE * _LANE)
    tb = min(8192, max_rows)

    b_round = _round_up(max(batch, 1), _LANE)
    tb = min(tb, b_round)
    if b_round >= 2 * _LANE:
        # >= 2 (roughly even) grid steps so the "parallel" batch axis can
        # shard across v7x's two TensorCores; costs nothing on v5e/v6e.
        tb = min(tb, _round_up((b_round + 1) // 2, _LANE))
    return tb, vmem_limit


@functools.partial(jax.jit, static_argnames=("param_dtype",))
def fm_forward(feature_indices, linear_table, embedding_table, bias,
               param_dtype=jnp.float32):
    """FM forward: one fused-layout gather in JAX, FM reductions in Pallas."""
    B, F = feature_indices.shape
    V, D = embedding_table.shape
    W = D + 1
    slab_width = F * W
    itemsize = np.dtype(param_dtype).itemsize

    TB, vmem_limit = _choose_batch_tile(B, slab_width, itemsize)
    B_pad = _round_up(B, TB)
    nb = B_pad // TB

    # [factors | first-order weight] per feature id: one row-gather then gives
    # the kernel's slab layout with a free reshape (no transpose, no extra
    # HBM pass over the gathered activations).
    table = jnp.concatenate(
        [embedding_table, linear_table.reshape(V, 1)], axis=1
    ).astype(param_dtype)                                       # (V, D+1)

    idx = feature_indices
    if B_pad != B:
        idx = jnp.concatenate(
            [idx, jnp.zeros((B_pad - B, F), dtype=idx.dtype)], axis=0)

    slab = jnp.take(table, idx, axis=0).reshape(B_pad, slab_width)   # (B_pad, F*(D+1))

    out = pl.pallas_call(
        functools.partial(fm_kernel, num_fields=F, embedding_dim=D),
        out_shape=jax.ShapeDtypeStruct((B_pad, 1), jnp.float32),
        grid=(nb,),
        in_specs=[pl.BlockSpec((TB, slab_width), lambda i: (i, 0))],
        out_specs=pl.BlockSpec((TB, 1), lambda i: (i, 0)),
        compiler_params=pltpu.CompilerParams(
            dimension_semantics=("parallel",),
            vmem_limit_bytes=vmem_limit),
    )(slab)

    return out[:B, 0] + bias[0].astype(jnp.float32)              # (B,)


def fm_reference(feature_indices, linear_table, embedding_table, bias,
                 param_dtype=jnp.float32):
    """Pure-JAX reference matching the PyTorch forward (params cast to
    `param_dtype` for storage, all math in f32, like the kernel path)."""
    lin_w = linear_table.astype(param_dtype).astype(jnp.float32)
    emb_w = embedding_table.astype(param_dtype).astype(jnp.float32)
    lin = jnp.take(lin_w, feature_indices, axis=0)                # (B, F, 1)
    linear_part = jnp.sum(lin, axis=1)[:, 0]                      # (B,)
    emb = jnp.take(emb_w, feature_indices, axis=0)                # (B, F, D)
    square_of_sum = jnp.sum(emb, axis=1) ** 2                     # (B, D)
    sum_of_square = jnp.sum(emb ** 2, axis=1)                     # (B, D)
    interaction = 0.5 * jnp.sum(square_of_sum - sum_of_square, axis=1)
    return linear_part + interaction + bias[0].astype(jnp.float32)


if __name__ == "__main__":
    # Small, deterministic setup consistent with the PyTorch module.
    num_features = 32       # vocab size (num users + num movies)
    embedding_dim = 8
    batch_size = 2
    num_fields = 8          # fields per example (second dim of feature_indices)

    key = jax.random.PRNGKey(0)
    k_lin, k_emb, k_idx = jax.random.split(key, 3)

    # nn.Embedding default init ~ N(0, 1); bias = zeros(1).
    linear_table = jax.random.normal(k_lin, (num_features, 1), dtype=jnp.float32)
    embedding_table = jax.random.normal(
        k_emb, (num_features, embedding_dim), dtype=jnp.float32)
    bias = jnp.zeros((1,), dtype=jnp.float32)

    feature_indices = jax.random.randint(
        k_idx, (batch_size, num_fields), 0, num_features, dtype=jnp.int32)

    # f32 parameters: exact parity with the original FMModel forward.
    out = jax.block_until_ready(
        fm_forward(feature_indices, linear_table, embedding_table, bias,
                   param_dtype=jnp.float32))
    ref = jax.block_until_ready(
        fm_reference(feature_indices, linear_table, embedding_table, bias,
                     param_dtype=jnp.float32))
    np.testing.assert_allclose(np.asarray(out), np.asarray(ref),
                               rtol=1e-5, atol=1e-4)

    # bf16 parameter storage (halves HBM bytes); math stays f32 in-kernel.
    out_bf = jax.block_until_ready(
        fm_forward(feature_indices, linear_table, embedding_table, bias,
                   param_dtype=jnp.bfloat16))
    ref_bf = jax.block_until_ready(
        fm_reference(feature_indices, linear_table, embedding_table, bias,
                     param_dtype=jnp.bfloat16))
    np.testing.assert_allclose(np.asarray(out_bf), np.asarray(ref_bf),
                               rtol=2e-2, atol=2e-2)

    print("KERNEL_OK")
</pallas_src>

<mosaic_0001>
module attributes {stable_mosaic.version = 11 : i64} {
  func.func @fm_kernel(%arg0: i32, %arg1: memref<128x72xf32, #tpu.memory_space<vmem>>, %arg2: memref<128x1xf32, #tpu.memory_space<vmem>>) attributes {dimension_semantics = [#tpu.dimension_semantics<parallel>], iteration_bounds = array<i64: 1>, scalar_prefetch = 0 : i64, scratch_operands = 0 : i64, tpu.core_type = #tpu.core_type<tc>, window_params = [{transform_indices = @transform_0, window_bounds = array<i64: 128, 72>}, {transform_indices = @transform_1, window_bounds = array<i64: 128, 1>}]} {
    %c0 = arith.constant 0 : index
    %c0_0 = arith.constant 0 : index
    %0 = vector.load %arg1[%c0, %c0_0] : memref<128x72xf32, #tpu.memory_space<vmem>>, vector<128x9xf32>
    %1 = vector.extract_strided_slice %0 {offsets = [0, 0], sizes = [128, 8], strides = [1, 1]} : vector<128x9xf32> to vector<128x8xf32>
    %2 = vector.extract_strided_slice %0 {offsets = [0, 0], sizes = [128, 8], strides = [1, 1]} : vector<128x9xf32> to vector<128x8xf32>
    %3 = arith.mulf %1, %2 : vector<128x8xf32>
    %cst = arith.constant dense<0.000000e+00> : vector<128xf32>
    %4 = vector.multi_reduction <add>, %3, %cst [1] : vector<128x8xf32> to vector<128xf32>
    %5 = vector.shape_cast %4 : vector<128xf32> to vector<128x1xf32>
    %c0_1 = arith.constant 0 : index
    %c9 = arith.constant 9 : index
    %6 = vector.load %arg1[%c0_1, %c9] : memref<128x72xf32, #tpu.memory_space<vmem>>, vector<128x9xf32>
    %7 = arith.addf %0, %6 : vector<128x9xf32>
    %8 = vector.extract_strided_slice %6 {offsets = [0, 0], sizes = [128, 8], strides = [1, 1]} : vector<128x9xf32> to vector<128x8xf32>
    %9 = vector.extract_strided_slice %6 {offsets = [0, 0], sizes = [128, 8], strides = [1, 1]} : vector<128x9xf32> to vector<128x8xf32>
    %10 = arith.mulf %8, %9 : vector<128x8xf32>
    %cst_2 = arith.constant dense<0.000000e+00> : vector<128xf32>
    %11 = vector.multi_reduction <add>, %10, %cst_2 [1] : vector<128x8xf32> to vector<128xf32>
    %12 = vector.shape_cast %11 : vector<128xf32> to vector<128x1xf32>
    %13 = arith.addf %5, %12 : vector<128x1xf32>
    %c0_3 = arith.constant 0 : index
    %c18 = arith.constant 18 : index
    %14 = vector.load %arg1[%c0_3, %c18] : memref<128x72xf32, #tpu.memory_space<vmem>>, vector<128x9xf32>
    %15 = arith.addf %7, %14 : vector<128x9xf32>
    %16 = vector.extract_strided_slice %14 {offsets = [0, 0], sizes = [128, 8], strides = [1, 1]} : vector<128x9xf32> to vector<128x8xf32>
    %17 = vector.extract_strided_slice %14 {offsets = [0, 0], sizes = [128, 8], strides = [1, 1]} : vector<128x9xf32> to vector<128x8xf32>
    %18 = arith.mulf %16, %17 : vector<128x8xf32>
    %cst_4 = arith.constant dense<0.000000e+00> : vector<128xf32>
    %19 = vector.multi_reduction <add>, %18, %cst_4 [1] : vector<128x8xf32> to vector<128xf32>
    %20 = vector.shape_cast %19 : vector<128xf32> to vector<128x1xf32>
    %21 = arith.addf %13, %20 : vector<128x1xf32>
    %c0_5 = arith.constant 0 : index
    %c27 = arith.constant 27 : index
    %22 = vector.load %arg1[%c0_5, %c27] : memref<128x72xf32, #tpu.memory_space<vmem>>, vector<128x9xf32>
    %23 = arith.addf %15, %22 : vector<128x9xf32>
    %24 = vector.extract_strided_slice %22 {offsets = [0, 0], sizes = [128, 8], strides = [1, 1]} : vector<128x9xf32> to vector<128x8xf32>
    %25 = vector.extract_strided_slice %22 {offsets = [0, 0], sizes = [128, 8], strides = [1, 1]} : vector<128x9xf32> to vector<128x8xf32>
    %26 = arith.mulf %24, %25 : vector<128x8xf32>
    %cst_6 = arith.constant dense<0.000000e+00> : vector<128xf32>
    %27 = vector.multi_reduction <add>, %26, %cst_6 [1] : vector<128x8xf32> to vector<128xf32>
    %28 = vector.shape_cast %27 : vector<128xf32> to vector<128x1xf32>
    %29 = arith.addf %21, %28 : vector<128x1xf32>
    %c0_7 = arith.constant 0 : index
    %c36 = arith.constant 36 : index
    %30 = vector.load %arg1[%c0_7, %c36] : memref<128x72xf32, #tpu.memory_space<vmem>>, vector<128x9xf32>
    %31 = arith.addf %23, %30 : vector<128x9xf32>
    %32 = vector.extract_strided_slice %30 {offsets = [0, 0], sizes = [128, 8], strides = [1, 1]} : vector<128x9xf32> to vector<128x8xf32>
    %33 = vector.extract_strided_slice %30 {offsets = [0, 0], sizes = [128, 8], strides = [1, 1]} : vector<128x9xf32> to vector<128x8xf32>
    %34 = arith.mulf %32, %33 : vector<128x8xf32>
    %cst_8 = arith.constant dense<0.000000e+00> : vector<128xf32>
    %35 = vector.multi_reduction <add>, %34, %cst_8 [1] : vector<128x8xf32> to vector<128xf32>
    %36 = vector.shape_cast %35 : vector<128xf32> to vector<128x1xf32>
    %37 = arith.addf %29, %36 : vector<128x1xf32>
    %c0_9 = arith.constant 0 : index
    %c45 = arith.constant 45 : index
    %38 = vector.load %arg1[%c0_9, %c45] : memref<128x72xf32, #tpu.memory_space<vmem>>, vector<128x9xf32>
    %39 = arith.addf %31, %38 : vector<128x9xf32>
    %40 = vector.extract_strided_slice %38 {offsets = [0, 0], sizes = [128, 8], strides = [1, 1]} : vector<128x9xf32> to vector<128x8xf32>
    %41 = vector.extract_strided_slice %38 {offsets = [0, 0], sizes = [128, 8], strides = [1, 1]} : vector<128x9xf32> to vector<128x8xf32>
    %42 = arith.mulf %40, %41 : vector<128x8xf32>
    %cst_10 = arith.constant dense<0.000000e+00> : vector<128xf32>
    %43 = vector.multi_reduction <add>, %42, %cst_10 [1] : vector<128x8xf32> to vector<128xf32>
    %44 = vector.shape_cast %43 : vector<128xf32> to vector<128x1xf32>
    %45 = arith.addf %37, %44 : vector<128x1xf32>
    %c0_11 = arith.constant 0 : index
    %c54 = arith.constant 54 : index
    %46 = vector.load %arg1[%c0_11, %c54] : memref<128x72xf32, #tpu.memory_space<vmem>>, vector<128x9xf32>
    %47 = arith.addf %39, %46 : vector<128x9xf32>
    %48 = vector.extract_strided_slice %46 {offsets = [0, 0], sizes = [128, 8], strides = [1, 1]} : vector<128x9xf32> to vector<128x8xf32>
    %49 = vector.extract_strided_slice %46 {offsets = [0, 0], sizes = [128, 8], strides = [1, 1]} : vector<128x9xf32> to vector<128x8xf32>
    %50 = arith.mulf %48, %49 : vector<128x8xf32>
    %cst_12 = arith.constant dense<0.000000e+00> : vector<128xf32>
    %51 = vector.multi_reduction <add>, %50, %cst_12 [1] : vector<128x8xf32> to vector<128xf32>
    %52 = vector.shape_cast %51 : vector<128xf32> to vector<128x1xf32>
    %53 = arith.addf %45, %52 : vector<128x1xf32>
    %c0_13 = arith.constant 0 : index
    %c63 = arith.constant 63 : index
    %54 = vector.load %arg1[%c0_13, %c63] : memref<128x72xf32, #tpu.memory_space<vmem>>, vector<128x9xf32>
    %55 = arith.addf %47, %54 : vector<128x9xf32>
    %56 = vector.extract_strided_slice %54 {offsets = [0, 0], sizes = [128, 8], strides = [1, 1]} : vector<128x9xf32> to vector<128x8xf32>
    %57 = vector.extract_strided_slice %54 {offsets = [0, 0], sizes = [128, 8], strides = [1, 1]} : vector<128x9xf32> to vector<128x8xf32>
    %58 = arith.mulf %56, %57 : vector<128x8xf32>
    %cst_14 = arith.constant dense<0.000000e+00> : vector<128xf32>
    %59 = vector.multi_reduction <add>, %58, %cst_14 [1] : vector<128x8xf32> to vector<128xf32>
    %60 = vector.shape_cast %59 : vector<128xf32> to vector<128x1xf32>
    %61 = arith.addf %53, %60 : vector<128x1xf32>
    %62 = vector.extract_strided_slice %55 {offsets = [0, 8], sizes = [128, 1], strides = [1, 1]} : vector<128x9xf32> to vector<128x1xf32>
    %63 = vector.extract_strided_slice %55 {offsets = [0, 0], sizes = [128, 8], strides = [1, 1]} : vector<128x9xf32> to vector<128x8xf32>
    %64 = vector.extract_strided_slice %55 {offsets = [0, 0], sizes = [128, 8], strides = [1, 1]} : vector<128x9xf32> to vector<128x8xf32>
    %65 = arith.mulf %63, %64 : vector<128x8xf32>
    %cst_15 = arith.constant dense<0.000000e+00> : vector<128xf32>
    %66 = vector.multi_reduction <add>, %65, %cst_15 [1] : vector<128x8xf32> to vector<128xf32>
    %67 = vector.shape_cast %66 : vector<128xf32> to vector<128x1xf32>
    %68 = arith.subf %67, %61 : vector<128x1xf32>
    %cst_16 = arith.constant 5.000000e-01 : f32
    %69 = vector.broadcast %cst_16 : f32 to vector<128x1xf32>
    %70 = arith.mulf %69, %68 : vector<128x1xf32>
    %71 = arith.addf %62, %70 : vector<128x1xf32>
    %c0_17 = arith.constant 0 : index
    %c0_18 = arith.constant 0 : index
    %72 = vector.load %arg2[%c0_17, %c0_18] : memref<128x1xf32, #tpu.memory_space<vmem>>, vector<128x1xf32>
    tpu.vector_store %arg2[%c0_17, %c0_18], %71 {strides = array<i32>} : memref<128x1xf32, #tpu.memory_space<vmem>>, vector<128x1xf32>,
    return
  }
  func.func @transform_0(%arg0: i32) -> (i32, i32) {
    %c0_i32 = arith.constant 0 : i32
    %c0_i32_0 = arith.constant 0 : i32
    return %arg0, %c0_i32 : i32, i32
  }
  func.func @transform_1(%arg0: i32) -> (i32, i32) {
    %c0_i32 = arith.constant 0 : i32
    %c0_i32_0 = arith.constant 0 : i32
    return %arg0, %c0_i32 : i32, i32
  }
}

</mosaic_0001>

<llo_original>
// kernel: fm_forward.1
$region0: #{fm_forward.1}
  #allocation0 [shape = 'u32[]', space=smem, size = 0x4, offset = 0x4, fixed_abs, tag = 'smem constant byte address 0x4 - core index']
  #allocation1 [shape = 'u32[144,128]{1,0:T(1,128)}', space=vmem, size = 0x12000, scoped, tag = 'internal scratch']
  %s0 = inlined_call_operand.vmem [shape: f32[128,72], index: 0, kind: input, shape index: {}]
  %s1 = inlined_call_operand.vmem [shape: f32[128,1], index: 1, kind: output, shape index: {}]
  %s2 = sld [smem:[#allocation0]]
  $region14: #{fm_forward.1} parent=0
    _
  %s4 = ssub.s32 1, %s2
  %s5 = scalar_select 0, %s4, %s2
  // Predicated region
  $region2: #{fm_forward.1} parent=0 // pred_check
    _
  $region3: #{fm_forward.1} parent=0 // pred_check_branch
    %7 = sbr.rel (0) target = $region5
  $region4: #{fm_forward.1} parent=0 // pred_region
    _
  $region5: #{fm_forward.1} parent=0 // pred_fallthru
    _
  %v8 = vld [vmem:[%s0] sm:$0xff]
  %v9 = vld [vmem:[%s0 + $0x8] sm:$0xff]
  %v10 = vld [vmem:[%s0 + $0x10] sm:$0xff]
  %v11 = vld [vmem:[%s0 + $0x18] sm:$0xff]
  %v12 = vld [vmem:[%s0 + $0x20] sm:$0xff]
  %v13 = vld [vmem:[%s0 + $0x28] sm:$0xff]
  %v14 = vld [vmem:[%s0 + $0x30] sm:$0xff]
  %v15 = vld [vmem:[%s0 + $0x38] sm:$0xff]
  %v16 = vld [vmem:[%s0 + $0x40] sm:$0xff]
  %v17 = vld [vmem:[%s0 + $0x48] sm:$0xff]
  %v18 = vld [vmem:[%s0 + $0x50] sm:$0xff]
  %v19 = vld [vmem:[%s0 + $0x58] sm:$0xff]
  %v20 = vld [vmem:[%s0 + $0x60] sm:$0xff]
  %v21 = vld [vmem:[%s0 + $0x68] sm:$0xff]
  %v22 = vld [vmem:[%s0 + $0x70] sm:$0xff]
  %v23 = vld [vmem:[%s0 + $0x78] sm:$0xff]
  %v24 = vmul.f32 %v8, %v8
  %v25 = vmul.f32 %v9, %v9
  %v26 = vmul.f32 %v10, %v10
  %v27 = vmul.f32 %v11, %v11
  %v28 = vmul.f32 %v12, %v12
  %v29 = vmul.f32 %v13, %v13
  %v30 = vmul.f32 %v14, %v14
  %v31 = vmul.f32 %v15, %v15
  %v32 = vmul.f32 %v16, %v16
  %v33 = vmul.f32 %v17, %v17
  %v34 = vmul.f32 %v18, %v18
  %v35 = vmul.f32 %v19, %v19
  %v36 = vmul.f32 %v20, %v20
  %v37 = vmul.f32 %v21, %v21
  %v38 = vmul.f32 %v22, %v22
  %v39 = vmul.f32 %v23, %v23
  %vm40 = vcmask 64512
  %v41 = vsel %vm40, %v24, 0.0
  %42 = vadd.xlane.f32.xlu0 %v41
  %v43 = vpop.xlane.xlu0 %42
  %v44 = vsel %vm40, %v25, 0.0
  %45 = vadd.xlane.f32.xlu0 %v44
  %v46 = vpop.xlane.xlu0 %45
  %v47 = vsel %vm40, %v26, 0.0
  %48 = vadd.xlane.f32.xlu0 %v47
  %v49 = vpop.xlane.xlu0 %48
  %v50 = vsel %vm40, %v27, 0.0
  %51 = vadd.xlane.f32.xlu0 %v50
  %v52 = vpop.xlane.xlu0 %51
  %v53 = vsel %vm40, %v28, 0.0
  %54 = vadd.xlane.f32.xlu0 %v53
  %v55 = vpop.xlane.xlu0 %54
  %v56 = vsel %vm40, %v29, 0.0
  %57 = vadd.xlane.f32.xlu0 %v56
  %v58 = vpop.xlane.xlu0 %57
  %v59 = vsel %vm40, %v30, 0.0
  %60 = vadd.xlane.f32.xlu0 %v59
  %v61 = vpop.xlane.xlu0 %60
  %v62 = vsel %vm40, %v31, 0.0
  %63 = vadd.xlane.f32.xlu0 %v62
  %v64 = vpop.xlane.xlu0 %63
  %v65 = vsel %vm40, %v32, 0.0
  %66 = vadd.xlane.f32.xlu0 %v65
  %v67 = vpop.xlane.xlu0 %66
  %v68 = vsel %vm40, %v33, 0.0
  %69 = vadd.xlane.f32.xlu0 %v68
  %v70 = vpop.xlane.xlu0 %69
  %v71 = vsel %vm40, %v34, 0.0
  %72 = vadd.xlane.f32.xlu0 %v71
  %v73 = vpop.xlane.xlu0 %72
  %v74 = vsel %vm40, %v35, 0.0
  %75 = vadd.xlane.f32.xlu0 %v74
  %v76 = vpop.xlane.xlu0 %75
  %v77 = vsel %vm40, %v36, 0.0
  %78 = vadd.xlane.f32.xlu0 %v77
  %v79 = vpop.xlane.xlu0 %78
  %v80 = vsel %vm40, %v37, 0.0
  %81 = vadd.xlane.f32.xlu0 %v80
  %v82 = vpop.xlane.xlu0 %81
  %v83 = vsel %vm40, %v38, 0.0
  %84 = vadd.xlane.f32.xlu0 %v83
  %v85 = vpop.xlane.xlu0 %84
  %v86 = vsel %vm40, %v39, 0.0
  %87 = vadd.xlane.f32.xlu0 %v86
  %v88 = vpop.xlane.xlu0 %87
  %105 = vrot.lane.b32.xlu0 %v8, 119
  %v106 = vpop.permute.xlu0 %105
  %107 = vrot.lane.b32.xlu0 %v9, 119
  %v108 = vpop.permute.xlu0 %107
  %109 = vrot.lane.b32.xlu0 %v10, 119
  %v110 = vpop.permute.xlu0 %109
  %111 = vrot.lane.b32.xlu0 %v11, 119
  %v112 = vpop.permute.xlu0 %111
  %113 = vrot.lane.b32.xlu0 %v12, 119
  %v114 = vpop.permute.xlu0 %113
  %115 = vrot.lane.b32.xlu0 %v13, 119
  %v116 = vpop.permute.xlu0 %115
  %117 = vrot.lane.b32.xlu0 %v14, 119
  %v118 = vpop.permute.xlu0 %117
  %119 = vrot.lane.b32.xlu0 %v15, 119
  %v120 = vpop.permute.xlu0 %119
  %121 = vrot.lane.b32.xlu0 %v16, 119
  %v122 = vpop.permute.xlu0 %121
  %123 = vrot.lane.b32.xlu0 %v17, 119
  %v124 = vpop.permute.xlu0 %123
  %125 = vrot.lane.b32.xlu0 %v18, 119
  %v126 = vpop.permute.xlu0 %125
  %127 = vrot.lane.b32.xlu0 %v19, 119
  %v128 = vpop.permute.xlu0 %127
  %129 = vrot.lane.b32.xlu0 %v20, 119
  %v130 = vpop.permute.xlu0 %129
  %131 = vrot.lane.b32.xlu0 %v21, 119
  %v132 = vpop.permute.xlu0 %131
  %133 = vrot.lane.b32.xlu0 %v22, 119
  %v134 = vpop.permute.xlu0 %133
  %135 = vrot.lane.b32.xlu0 %v23, 119
  %v136 = vpop.permute.xlu0 %135
  %v153 = vadd.f32 %v8, %v106
  %v154 = vadd.f32 %v9, %v108
  %v155 = vadd.f32 %v10, %v110
  %v156 = vadd.f32 %v11, %v112
  %v157 = vadd.f32 %v12, %v114
  %v158 = vadd.f32 %v13, %v116
  %v159 = vadd.f32 %v14, %v118
  %v160 = vadd.f32 %v15, %v120
  %v161 = vadd.f32 %v16, %v122
  %v162 = vadd.f32 %v17, %v124
  %v163 = vadd.f32 %v18, %v126
  %v164 = vadd.f32 %v19, %v128
  %v165 = vadd.f32 %v20, %v130
  %v166 = vadd.f32 %v21, %v132
  %v167 = vadd.f32 %v22, %v134
  %v168 = vadd.f32 %v23, %v136
  %185 = vrot.lane.b32.xlu0 %v24, 119
  %v186 = vpop.permute.xlu0 %185
  %187 = vrot.lane.b32.xlu0 %v25, 119
  %v188 = vpop.permute.xlu0 %187
  %189 = vrot.lane.b32.xlu0 %v26, 119
  %v190 = vpop.permute.xlu0 %189
  %191 = vrot.lane.b32.xlu0 %v27, 119
  %v192 = vpop.permute.xlu0 %191
  %193 = vrot.lane.b32.xlu0 %v28, 119
  %v194 = vpop.permute.xlu0 %193
  %195 = vrot.lane.b32.xlu0 %v29, 119
  %v196 = vpop.permute.xlu0 %195
  %197 = vrot.lane.b32.xlu0 %v30, 119
  %v198 = vpop.permute.xlu0 %197
  %199 = vrot.lane.b32.xlu0 %v31, 119
  %v200 = vpop.permute.xlu0 %199
  %201 = vrot.lane.b32.xlu0 %v32, 119
  %v202 = vpop.permute.xlu0 %201
  %203 = vrot.lane.b32.xlu0 %v33, 119
  %v204 = vpop.permute.xlu0 %203
  %205 = vrot.lane.b32.xlu0 %v34, 119
  %v206 = vpop.permute.xlu0 %205
  %207 = vrot.lane.b32.xlu0 %v35, 119
  %v208 = vpop.permute.xlu0 %207
  %209 = vrot.lane.b32.xlu0 %v36, 119
  %v210 = vpop.permute.xlu0 %209
  %211 = vrot.lane.b32.xlu0 %v37, 119
  %v212 = vpop.permute.xlu0 %211
  %213 = vrot.lane.b32.xlu0 %v38, 119
  %v214 = vpop.permute.xlu0 %213
  %215 = vrot.lane.b32.xlu0 %v39, 119
  %v216 = vpop.permute.xlu0 %215
  %v233 = vsel %vm40, %v186, 0.0
  %234 = vadd.xlane.f32.xlu0 %v233
  %v235 = vpop.xlane.xlu0 %234
  %v236 = vsel %vm40, %v188, 0.0
  %237 = vadd.xlane.f32.xlu0 %v236
  %v238 = vpop.xlane.xlu0 %237
  %v239 = vsel %vm40, %v190, 0.0
  %240 = vadd.xlane.f32.xlu0 %v239
  %v241 = vpop.xlane.xlu0 %240
  %v242 = vsel %vm40, %v192, 0.0
  %243 = vadd.xlane.f32.xlu0 %v242
  %v244 = vpop.xlane.xlu0 %243
  %v245 = vsel %vm40, %v194, 0.0
  %246 = vadd.xlane.f32.xlu0 %v245
  %v247 = vpop.xlane.xlu0 %246
  %v248 = vsel %vm40, %v196, 0.0
  %249 = vadd.xlane.f32.xlu0 %v248
  %v250 = vpop.xlane.xlu0 %249
  %v251 = vsel %vm40, %v198, 0.0
  %252 = vadd.xlane.f32.xlu0 %v251
  %v253 = vpop.xlane.xlu0 %252
  %v254 = vsel %vm40, %v200, 0.0
  %255 = vadd.xlane.f32.xlu0 %v254
  %v256 = vpop.xlane.xlu0 %255
  %v257 = vsel %vm40, %v202, 0.0
  %258 = vadd.xlane.f32.xlu0 %v257
  %v259 = vpop.xlane.xlu0 %258
  %v260 = vsel %vm40, %v204, 0.0
  %261 = vadd.xlane.f32.xlu0 %v260
  %v262 = vpop.xlane.xlu0 %261
  %v263 = vsel %vm40, %v206, 0.0
  %264 = vadd.xlane.f32.xlu0 %v263
  %v265 = vpop.xlane.xlu0 %264
  %v266 = vsel %vm40, %v208, 0.0
  %267 = vadd.xlane.f32.xlu0 %v266
  %v268 = vpop.xlane.xlu0 %267
  %v269 = vsel %vm40, %v210, 0.0
  %270 = vadd.xlane.f32.xlu0 %v269
  %v271 = vpop.xlane.xlu0 %270
  %v272 = vsel %vm40, %v212, 0.0
  %273 = vadd.xlane.f32.xlu0 %v272
  %v274 = vpop.xlane.xlu0 %273
  %v275 = vsel %vm40, %v214, 0.0
  %276 = vadd.xlane.f32.xlu0 %v275
  %v277 = vpop.xlane.xlu0 %276
  %v278 = vsel %vm40, %v216, 0.0
  %279 = vadd.xlane.f32.xlu0 %v278
  %v280 = vpop.xlane.xlu0 %279
  %v281 = vadd.f32 %v43, %v235
  %v282 = vadd.f32 %v46, %v238
  %v283 = vadd.f32 %v49, %v241
  %v284 = vadd.f32 %v52, %v244
  %v285 = vadd.f32 %v55, %v247
  %v286 = vadd.f32 %v58, %v250
  %v287 = vadd.f32 %v61, %v253
  %v288 = vadd.f32 %v64, %v256
  %v289 = vadd.f32 %v67, %v259
  %v290 = vadd.f32 %v70, %v262
  %v291 = vadd.f32 %v73, %v265
  %v292 = vadd.f32 %v76, %v268
  %v293 = vadd.f32 %v79, %v271
  %v294 = vadd.f32 %v82, %v274
  %v295 = vadd.f32 %v85, %v277
  %v296 = vadd.f32 %v88, %v280
  %297 = vrot.lane.b32.xlu0 %v8, 110
  %v298 = vpop.permute.xlu0 %297
  %299 = vrot.lane.b32.xlu0 %v9, 110
  %v300 = vpop.permute.xlu0 %299
  %301 = vrot.lane.b32.xlu0 %v10, 110
  %v302 = vpop.permute.xlu0 %301
  %303 = vrot.lane.b32.xlu0 %v11, 110
  %v304 = vpop.permute.xlu0 %303
  %305 = vrot.lane.b32.xlu0 %v12, 110
  %v306 = vpop.permute.xlu0 %305
  %307 = vrot.lane.b32.xlu0 %v13, 110
  %v308 = vpop.permute.xlu0 %307
  %309 = vrot.lane.b32.xlu0 %v14, 110
  %v310 = vpop.permute.xlu0 %309
  %311 = vrot.lane.b32.xlu0 %v15, 110
  %v312 = vpop.permute.xlu0 %311
  %313 = vrot.lane.b32.xlu0 %v16, 110
  %v314 = vpop.permute.xlu0 %313
  %315 = vrot.lane.b32.xlu0 %v17, 110
  %v316 = vpop.permute.xlu0 %315
  %317 = vrot.lane.b32.xlu0 %v18, 110
  %v318 = vpop.permute.xlu0 %317
  %319 = vrot.lane.b32.xlu0 %v19, 110
  %v320 = vpop.permute.xlu0 %319
  %321 = vrot.lane.b32.xlu0 %v20, 110
  %v322 = vpop.permute.xlu0 %321
  %323 = vrot.lane.b32.xlu0 %v21, 110
  %v324 = vpop.permute.xlu0 %323
  %325 = vrot.lane.b32.xlu0 %v22, 110
  %v326 = vpop.permute.xlu0 %325
  %327 = vrot.lane.b32.xlu0 %v23, 110
  %v328 = vpop.permute.xlu0 %327
  %v345 = vadd.f32 %v153, %v298
  %v346 = vadd.f32 %v154, %v300
  %v347 = vadd.f32 %v155, %v302
  %v348 = vadd.f32 %v156, %v304
  %v349 = vadd.f32 %v157, %v306
  %v350 = vadd.f32 %v158, %v308
  %v351 = vadd.f32 %v159, %v310
  %v352 = vadd.f32 %v160, %v312
  %v353 = vadd.f32 %v161, %v314
  %v354 = vadd.f32 %v162, %v316
  %v355 = vadd.f32 %v163, %v318
  %v356 = vadd.f32 %v164, %v320
  %v357 = vadd.f32 %v165, %v322
  %v358 = vadd.f32 %v166, %v324
  %v359 = vadd.f32 %v167, %v326
  %v360 = vadd.f32 %v168, %v328
  %361 = vrot.lane.b32.xlu0 %v24, 110
  %v362 = vpop.permute.xlu0 %361
  %363 = vrot.lane.b32.xlu0 %v25, 110
  %v364 = vpop.permute.xlu0 %363
  %365 = vrot.lane.b32.xlu0 %v26, 110
  %v366 = vpop.permute.xlu0 %365
  %367 = vrot.lane.b32.xlu0 %v27, 110
  %v368 = vpop.permute.xlu0 %367
  %369 = vrot.lane.b32.xlu0 %v28, 110
  %v370 = vpop.permute.xlu0 %369
  %371 = vrot.lane.b32.xlu0 %v29, 110
  %v372 = vpop.permute.xlu0 %371
  %373 = vrot.lane.b32.xlu0 %v30, 110
  %v374 = vpop.permute.xlu0 %373
  %375 = vrot.lane.b32.xlu0 %v31, 110
  %v376 = vpop.permute.xlu0 %375
  %377 = vrot.lane.b32.xlu0 %v32, 110
  %v378 = vpop.permute.xlu0 %377
  %379 = vrot.lane.b32.xlu0 %v33, 110
  %v380 = vpop.permute.xlu0 %379
  %381 = vrot.lane.b32.xlu0 %v34, 110
  %v382 = vpop.permute.xlu0 %381
  %383 = vrot.lane.b32.xlu0 %v35, 110
  %v384 = vpop.permute.xlu0 %383
  %385 = vrot.lane.b32.xlu0 %v36, 110
  %v386 = vpop.permute.xlu0 %385
  %387 = vrot.lane.b32.xlu0 %v37, 110
  %v388 = vpop.permute.xlu0 %387
  %389 = vrot.lane.b32.xlu0 %v38, 110
  %v390 = vpop.permute.xlu0 %389
  %391 = vrot.lane.b32.xlu0 %v39, 110
  %v392 = vpop.permute.xlu0 %391
  %v409 = vsel %vm40, %v362, 0.0
  %410 = vadd.xlane.f32.xlu0 %v409
  %v411 = vpop.xlane.xlu0 %410
  %v412 = vsel %vm40, %v364, 0.0
  %413 = vadd.xlane.f32.xlu0 %v412
  %v414 = vpop.xlane.xlu0 %413
  %v415 = vsel %vm40, %v366, 0.0
  %416 = vadd.xlane.f32.xlu0 %v415
  %v417 = vpop.xlane.xlu0 %416
  %v418 = vsel %vm40, %v368, 0.0
  %419 = vadd.xlane.f32.xlu0 %v418
  %v420 = vpop.xlane.xlu0 %419
  %v421 = vsel %vm40, %v370, 0.0
  %422 = vadd.xlane.f32.xlu0 %v421
  %v423 = vpop.xlane.xlu0 %422
  %v424 = vsel %vm40, %v372, 0.0
  %425 = vadd.xlane.f32.xlu0 %v424
  %v426 = vpop.xlane.xlu0 %425
  %v427 = vsel %vm40, %v374, 0.0
  %428 = vadd.xlane.f32.xlu0 %v427
  %v429 = vpop.xlane.xlu0 %428
  %v430 = vsel %vm40, %v376, 0.0
  %431 = vadd.xlane.f32.xlu0 %v430
  %v432 = vpop.xlane.xlu0 %431
  %v433 = vsel %vm40, %v378, 0.0
  %434 = vadd.xlane.f32.xlu0 %v433
  %v435 = vpop.xlane.xlu0 %434
  %v436 = vsel %vm40, %v380, 0.0
  %437 = vadd.xlane.f32.xlu0 %v436
  %v438 = vpop.xlane.xlu0 %437
  %v439 = vsel %vm40, %v382, 0.0
  %440 = vadd.xlane.f32.xlu0 %v439
  %v441 = vpop.xlane.xlu0 %440
  %v442 = vsel %vm40, %v384, 0.0
  %443 = vadd.xlane.f32.xlu0 %v442
  %v444 = vpop.xlane.xlu0 %443
  %v445 = vsel %vm40, %v386, 0.0
  %446 = vadd.xlane.f32.xlu0 %v445
  %v447 = vpop.xlane.xlu0 %446
  %v448 = vsel %vm40, %v388, 0.0
  %449 = vadd.xlane.f32.xlu0 %v448
  %v450 = vpop.xlane.xlu0 %449
  %v451 = vsel %vm40, %v390, 0.0
  %452 = vadd.xlane.f32.xlu0 %v451
  %v453 = vpop.xlane.xlu0 %452
  %v454 = vsel %vm40, %v392, 0.0
  %455 = vadd.xlane.f32.xlu0 %v454
  %v456 = vpop.xlane.xlu0 %455
  %v457 = vadd.f32 %v281, %v411
  %v458 = vadd.f32 %v282, %v414
  %v459 = vadd.f32 %v283, %v417
  %v460 = vadd.f32 %v284, %v420
  %v461 = vadd.f32 %v285, %v423
  %v462 = vadd.f32 %v286, %v426
  %v463 = vadd.f32 %v287, %v429
  %v464 = vadd.f32 %v288, %v432
  %v465 = vadd.f32 %v289, %v435
  %v466 = vadd.f32 %v290, %v438
  %v467 = vadd.f32 %v291, %v441
  %v468 = vadd.f32 %v292, %v444
  %v469 = vadd.f32 %v293, %v447
  %v470 = vadd.f32 %v294, %v450
  %v471 = vadd.f32 %v295, %v453
  %v472 = vadd.f32 %v296, %v456
  %473 = vrot.lane.b32.xlu0 %v8, 101
  %v474 = vpop.permute.xlu0 %473
  %475 = vrot.lane.b32.xlu0 %v9, 101
  %v476 = vpop.permute.xlu0 %475
  %477 = vrot.lane.b32.xlu0 %v10, 101
  %v478 = vpop.permute.xlu0 %477
  %479 = vrot.lane.b32.xlu0 %v11, 101
  %v480 = vpop.permute.xlu0 %479
  %481 = vrot.lane.b32.xlu0 %v12, 101
  %v482 = vpop.permute.xlu0 %481
  %483 = vrot.lane.b32.xlu0 %v13, 101
  %v484 = vpop.permute.xlu0 %483
  %485 = vrot.lane.b32.xlu0 %v14, 101
  %v486 = vpop.permute.xlu0 %485
  %487 = vrot.lane.b32.xlu0 %v15, 101
  %v488 = vpop.permute.xlu0 %487
  %489 = vrot.lane.b32.xlu0 %v16, 101
  %v490 = vpop.permute.xlu0 %489
  %491 = vrot.lane.b32.xlu0 %v17, 101
  %v492 = vpop.permute.xlu0 %491
  %493 = vrot.lane.b32.xlu0 %v18, 101
  %v494 = vpop.permute.xlu0 %493
  %495 = vrot.lane.b32.xlu0 %v19, 101
  %v496 = vpop.permute.xlu0 %495
  %497 = vrot.lane.b32.xlu0 %v20, 101
  %v498 = vpop.permute.xlu0 %497
  %499 = vrot.lane.b32.xlu0 %v21, 101
  %v500 = vpop.permute.xlu0 %499
  %501 = vrot.lane.b32.xlu0 %v22, 101
  %v502 = vpop.permute.xlu0 %501
  %503 = vrot.lane.b32.xlu0 %v23, 101
  %v504 = vpop.permute.xlu0 %503
  %v521 = vadd.f32 %v345, %v474
  %v522 = vadd.f32 %v346, %v476
  %v523 = vadd.f32 %v347, %v478
  %v524 = vadd.f32 %v348, %v480
  %v525 = vadd.f32 %v349, %v482
  %v526 = vadd.f32 %v350, %v484
  %v527 = vadd.f32 %v351, %v486
  %v528 = vadd.f32 %v352, %v488
  %v529 = vadd.f32 %v353, %v490
  %v530 = vadd.f32 %v354, %v492
  %v531 = vadd.f32 %v355, %v494
  %v532 = vadd.f32 %v356, %v496
  %v533 = vadd.f32 %v357, %v498
  %v534 = vadd.f32 %v358, %v500
  %v535 = vadd.f32 %v359, %v502
  %v536 = vadd.f32 %v360, %v504
  %537 = vrot.lane.b32.xlu0 %v24, 101
  %v538 = vpop.permute.xlu0 %537
  %539 = vrot.lane.b32.xlu0 %v25, 101
  %v540 = vpop.permute.xlu0 %539
  %541 = vrot.lane.b32.xlu0 %v26, 101
  %v542 = vpop.permute.xlu0 %541
  %543 = vrot.lane.b32.xlu0 %v27, 101
  %v544 = vpop.permute.xlu0 %543
  %545 = vrot.lane.b32.xlu0 %v28, 101
  %v546 = vpop.permute.xlu0 %545
  %547 = vrot.lane.b32.xlu0 %v29, 101
  %v548 = vpop.permute.xlu0 %547
  %549 = vrot.lane.b32.xlu0 %v30, 101
  %v550 = vpop.permute.xlu0 %549
  %551 = vrot.lane.b32.xlu0 %v31, 101
  %v552 = vpop.permute.xlu0 %551
  %553 = vrot.lane.b32.xlu0 %v32, 101
  %v554 = vpop.permute.xlu0 %553
  %555 = vrot.lane.b32.xlu0 %v33, 101
  %v556 = vpop.permute.xlu0 %555
  %557 = vrot.lane.b32.xlu0 %v34, 101
  %v558 = vpop.permute.xlu0 %557
  %559 = vrot.lane.b32.xlu0 %v35, 101
  %v560 = vpop.permute.xlu0 %559
  %561 = vrot.lane.b32.xlu0 %v36, 101
  %v562 = vpop.permute.xlu0 %561
  %563 = vrot.lane.b32.xlu0 %v37, 101
  %v564 = vpop.permute.xlu0 %563
  %565 = vrot.lane.b32.xlu0 %v38, 101
  %v566 = vpop.permute.xlu0 %565
  %567 = vrot.lane.b32.xlu0 %v39, 101
  %v568 = vpop.permute.xlu0 %567
  %v585 = vsel %vm40, %v538, 0.0
  %586 = vadd.xlane.f32.xlu0 %v585
  %v587 = vpop.xlane.xlu0 %586
  %v588 = vsel %vm40, %v540, 0.0
  %589 = vadd.xlane.f32.xlu0 %v588
  %v590 = vpop.xlane.xlu0 %589
  %v591 = vsel %vm40, %v542, 0.0
  %592 = vadd.xlane.f32.xlu0 %v591
  %v593 = vpop.xlane.xlu0 %592
  %v594 = vsel %vm40, %v544, 0.0
  %595 = vadd.xlane.f32.xlu0 %v594
  %v596 = vpop.xlane.xlu0 %595
  %v597 = vsel %vm40, %v546, 0.0
  %598 = vadd.xlane.f32.xlu0 %v597
  %v599 = vpop.xlane.xlu0 %598
  %v600 = vsel %vm40, %v548, 0.0
  %601 = vadd.xlane.f32.xlu0 %v600
  %v602 = vpop.xlane.xlu0 %601
  %v603 = vsel %vm40, %v550, 0.0
  %604 = vadd.xlane.f32.xlu0 %v603
  %v605 = vpop.xlane.xlu0 %604
  %v606 = vsel %vm40, %v552, 0.0
  %607 = vadd.xlane.f32.xlu0 %v606
  %v608 = vpop.xlane.xlu0 %607
  %v609 = vsel %vm40, %v554, 0.0
  %610 = vadd.xlane.f32.xlu0 %v609
  %v611 = vpop.xlane.xlu0 %610
  %v612 = vsel %vm40, %v556, 0.0
  %613 = vadd.xlane.f32.xlu0 %v612
  %v614 = vpop.xlane.xlu0 %613
  %v615 = vsel %vm40, %v558, 0.0
  %616 = vadd.xlane.f32.xlu0 %v615
  %v617 = vpop.xlane.xlu0 %616
  %v618 = vsel %vm40, %v560, 0.0
  %619 = vadd.xlane.f32.xlu0 %v618
  %v620 = vpop.xlane.xlu0 %619
  %v621 = vsel %vm40, %v562, 0.0
  %622 = vadd.xlane.f32.xlu0 %v621
  %v623 = vpop.xlane.xlu0 %622
  %v624 = vsel %vm40, %v564, 0.0
  %625 = vadd.xlane.f32.xlu0 %v624
  %v626 = vpop.xlane.xlu0 %625
  %v627 = vsel %vm40, %v566, 0.0
  %628 = vadd.xlane.f32.xlu0 %v627
  %v629 = vpop.xlane.xlu0 %628
  %v630 = vsel %vm40, %v568, 0.0
  %631 = vadd.xlane.f32.xlu0 %v630
  %v632 = vpop.xlane.xlu0 %631
  %v633 = vadd.f32 %v457, %v587
  %v634 = vadd.f32 %v458, %v590
  %v635 = vadd.f32 %v459, %v593
  %v636 = vadd.f32 %v460, %v596
  %v637 = vadd.f32 %v461, %v599
  %v638 = vadd.f32 %v462, %v602
  %v639 = vadd.f32 %v463, %v605
  %v640 = vadd.f32 %v464, %v608
  %v641 = vadd.f32 %v465, %v611
  %v642 = vadd.f32 %v466, %v614
  %v643 = vadd.f32 %v467, %v617
  %v644 = vadd.f32 %v468, %v620
  %v645 = vadd.f32 %v469, %v623
  %v646 = vadd.f32 %v470, %v626
  %v647 = vadd.f32 %v471, %v629
  %v648 = vadd.f32 %v472, %v632
  %649 = vrot.lane.b32.xlu0 %v8, 92
  %v650 = vpop.permute.xlu0 %649
  %651 = vrot.lane.b32.xlu0 %v9, 92
  %v652 = vpop.permute.xlu0 %651
  %653 = vrot.lane.b32.xlu0 %v10, 92
  %v654 = vpop.permute.xlu0 %653
  %655 = vrot.lane.b32.xlu0 %v11, 92
  %v656 = vpop.permute.xlu0 %655
  %657 = vrot.lane.b32.xlu0 %v12, 92
  %v658 = vpop.permute.xlu0 %657
  %659 = vrot.lane.b32.xlu0 %v13, 92
  %v660 = vpop.permute.xlu0 %659
  %661 = vrot.lane.b32.xlu0 %v14, 92
  %v662 = vpop.permute.xlu0 %661
  %663 = vrot.lane.b32.xlu0 %v15, 92
  %v664 = vpop.permute.xlu0 %663
  %665 = vrot.lane.b32.xlu0 %v16, 92
  %v666 = vpop.permute.xlu0 %665
  %667 = vrot.lane.b32.xlu0 %v17, 92
  %v668 = vpop.permute.xlu0 %667
  %669 = vrot.lane.b32.xlu0 %v18, 92
  %v670 = vpop.permute.xlu0 %669
  %671 = vrot.lane.b32.xlu0 %v19, 92
  %v672 = vpop.permute.xlu0 %671
  %673 = vrot.lane.b32.xlu0 %v20, 92
  %v674 = vpop.permute.xlu0 %673
  %675 = vrot.lane.b32.xlu0 %v21, 92
  %v676 = vpop.permute.xlu0 %675
  %677 = vrot.lane.b32.xlu0 %v22, 92
  %v678 = vpop.permute.xlu0 %677
  %679 = vrot.lane.b32.xlu0 %v23, 92
  %v680 = vpop.permute.xlu0 %679
  %v697 = vadd.f32 %v521, %v650
  %v698 = vadd.f32 %v522, %v652
  %v699 = vadd.f32 %v523, %v654
  %v700 = vadd.f32 %v524, %v656
  %v701 = vadd.f32 %v525, %v658
  %v702 = vadd.f32 %v526, %v660
  %v703 = vadd.f32 %v527, %v662
  %v704 = vadd.f32 %v528, %v664
  %v705 = vadd.f32 %v529, %v666
  %v706 = vadd.f32 %v530, %v668
  %v707 = vadd.f32 %v531, %v670
  %v708 = vadd.f32 %v532, %v672
  %v709 = vadd.f32 %v533, %v674
  %v710 = vadd.f32 %v534, %v676
  %v711 = vadd.f32 %v535, %v678
  %v712 = vadd.f32 %v536, %v680
  %713 = vrot.lane.b32.xlu0 %v24, 92
  %v714 = vpop.permute.xlu0 %713
  %715 = vrot.lane.b32.xlu0 %v25, 92
  %v716 = vpop.permute.xlu0 %715
  %717 = vrot.lane.b32.xlu0 %v26, 92
  %v718 = vpop.permute.xlu0 %717
  %719 = vrot.lane.b32.xlu0 %v27, 92
  %v720 = vpop.permute.xlu0 %719
  %721 = vrot.lane.b32.xlu0 %v28, 92
  %v722 = vpop.permute.xlu0 %721
  %723 = vrot.lane.b32.xlu0 %v29, 92
  %v724 = vpop.permute.xlu0 %723
  %725 = vrot.lane.b32.xlu0 %v30, 92
  %v726 = vpop.permute.xlu0 %725
  %727 = vrot.lane.b32.xlu0 %v31, 92
  %v728 = vpop.permute.xlu0 %727
  %729 = vrot.lane.b32.xlu0 %v32, 92
  %v730 = vpop.permute.xlu0 %729
  %731 = vrot.lane.b32.xlu0 %v33, 92
  %v732 = vpop.permute.xlu0 %731
  %733 = vrot.lane.b32.xlu0 %v34, 92
  %v734 = vpop.permute.xlu0 %733
  %735 = vrot.lane.b32.xlu0 %v35, 92
  %v736 = vpop.permute.xlu0 %735
  %737 = vrot.lane.b32.xlu0 %v36, 92
  %v738 = vpop.permute.xlu0 %737
  %739 = vrot.lane.b32.xlu0 %v37, 92
  %v740 = vpop.permute.xlu0 %739
  %741 = vrot.lane.b32.xlu0 %v38, 92
  %v742 = vpop.permute.xlu0 %741
  %743 = vrot.lane.b32.xlu0 %v39, 92
  %v744 = vpop.permute.xlu0 %743
  %v761 = vsel %vm40, %v714, 0.0
  %762 = vadd.xlane.f32.xlu0 %v761
  %v763 = vpop.xlane.xlu0 %762
  %v764 = vsel %vm40, %v716, 0.0
  %765 = vadd.xlane.f32.xlu0 %v764
  %v766 = vpop.xlane.xlu0 %765
  %v767 = vsel %vm40, %v718, 0.0
  %768 = vadd.xlane.f32.xlu0 %v767
  %v769 = vpop.xlane.xlu0 %768
  %v770 = vsel %vm40, %v720, 0.0
  %771 = vadd.xlane.f32.xlu0 %v770
  %v772 = vpop.xlane.xlu0 %771
  %v773 = vsel %vm40, %v722, 0.0
  %774 = vadd.xlane.f32.xlu0 %v773
  %v775 = vpop.xlane.xlu0 %774
  %v776 = vsel %vm40, %v724, 0.0
  %777 = vadd.xlane.f32.xlu0 %v776
  %v778 = vpop.xlane.xlu0 %777
  %v779 = vsel %vm40, %v726, 0.0
  %780 = vadd.xlane.f32.xlu0 %v779
  %v781 = vpop.xlane.xlu0 %780
  %v782 = vsel %vm40, %v728, 0.0
  %783 = vadd.xlane.f32.xlu0 %v782
  %v784 = vpop.xlane.xlu0 %783
  %v785 = vsel %vm40, %v730, 0.0
  %786 = vadd.xlane.f32.xlu0 %v785
  %v787 = vpop.xlane.xlu0 %786
  %v788 = vsel %vm40, %v732, 0.0
  %789 = vadd.xlane.f32.xlu0 %v788
  %v790 = vpop.xlane.xlu0 %789
  %v791 = vsel %vm40, %v734, 0.0
  %792 = vadd.xlane.f32.xlu0 %v791
  %v793 = vpop.xlane.xlu0 %792
  %v794 = vsel %vm40, %v736, 0.0
  %795 = vadd.xlane.f32.xlu0 %v794
  %v796 = vpop.xlane.xlu0 %795
  %v797 = vsel %vm40, %v738, 0.0
  %798 = vadd.xlane.f32.xlu0 %v797
  %v799 = vpop.xlane.xlu0 %798
  %v800 = vsel %vm40, %v740, 0.0
  %801 = vadd.xlane.f32.xlu0 %v800
  %v802 = vpop.xlane.xlu0 %801
  %v803 = vsel %vm40, %v742, 0.0
  %804 = vadd.xlane.f32.xlu0 %v803
  %v805 = vpop.xlane.xlu0 %804
  %v806 = vsel %vm40, %v744, 0.0
  %807 = vadd.xlane.f32.xlu0 %v806
  %v808 = vpop.xlane.xlu0 %807
  %v809 = vadd.f32 %v633, %v763
  %v810 = vadd.f32 %v634, %v766
  %v811 = vadd.f32 %v635, %v769
  %v812 = vadd.f32 %v636, %v772
  %v813 = vadd.f32 %v637, %v775
  %v814 = vadd.f32 %v638, %v778
  %v815 = vadd.f32 %v639, %v781
  %v816 = vadd.f32 %v640, %v784
  %v817 = vadd.f32 %v641, %v787
  %v818 = vadd.f32 %v642, %v790
  %v819 = vadd.f32 %v643, %v793
  %v820 = vadd.f32 %v644, %v796
  %v821 = vadd.f32 %v645, %v799
  %v822 = vadd.f32 %v646, %v802
  %v823 = vadd.f32 %v647, %v805
  %v824 = vadd.f32 %v648, %v808
  %825 = vrot.lane.b32.xlu0 %v8, 83
  %v826 = vpop.permute.xlu0 %825
  %827 = vrot.lane.b32.xlu0 %v9, 83
  %v828 = vpop.permute.xlu0 %827
  %829 = vrot.lane.b32.xlu0 %v10, 83
  %v830 = vpop.permute.xlu0 %829
  %831 = vrot.lane.b32.xlu0 %v11, 83
  %v832 = vpop.permute.xlu0 %831
  %833 = vrot.lane.b32.xlu0 %v12, 83
  %v834 = vpop.permute.xlu0 %833
  %835 = vrot.lane.b32.xlu0 %v13, 83
  %v836 = vpop.permute.xlu0 %835
  %837 = vrot.lane.b32.xlu0 %v14, 83
  %v838 = vpop.permute.xlu0 %837
  %839 = vrot.lane.b32.xlu0 %v15, 83
  %v840 = vpop.permute.xlu0 %839
  %841 = vrot.lane.b32.xlu0 %v16, 83
  %v842 = vpop.permute.xlu0 %841
  %843 = vrot.lane.b32.xlu0 %v17, 83
  %v844 = vpop.permute.xlu0 %843
  %845 = vrot.lane.b32.xlu0 %v18, 83
  %v846 = vpop.permute.xlu0 %845
  %847 = vrot.lane.b32.xlu0 %v19, 83
  %v848 = vpop.permute.xlu0 %847
  %849 = vrot.lane.b32.xlu0 %v20, 83
  %v850 = vpop.permute.xlu0 %849
  %851 = vrot.lane.b32.xlu0 %v21, 83
  %v852 = vpop.permute.xlu0 %851
  %853 = vrot.lane.b32.xlu0 %v22, 83
  %v854 = vpop.permute.xlu0 %853
  %855 = vrot.lane.b32.xlu0 %v23, 83
  %v856 = vpop.permute.xlu0 %855
  %v873 = vadd.f32 %v697, %v826
  %v874 = vadd.f32 %v698, %v828
  %v875 = vadd.f32 %v699, %v830
  %v876 = vadd.f32 %v700, %v832
  %v877 = vadd.f32 %v701, %v834
  %v878 = vadd.f32 %v702, %v836
  %v879 = vadd.f32 %v703, %v838
  %v880 = vadd.f32 %v704, %v840
  %v881 = vadd.f32 %v705, %v842
  %v882 = vadd.f32 %v706, %v844
  %v883 = vadd.f32 %v707, %v846
  %v884 = vadd.f32 %v708, %v848
  %v885 = vadd.f32 %v709, %v850
  %v886 = vadd.f32 %v710, %v852
  %v887 = vadd.f32 %v711, %v854
  %v888 = vadd.f32 %v712, %v856
  %889 = vrot.lane.b32.xlu0 %v24, 83
  %v890 = vpop.permute.xlu0 %889
  %891 = vrot.lane.b32.xlu0 %v25, 83
  %v892 = vpop.permute.xlu0 %891
  %893 = vrot.lane.b32.xlu0 %v26, 83
  %v894 = vpop.permute.xlu0 %893
  %895 = vrot.lane.b32.xlu0 %v27, 83
  %v896 = vpop.permute.xlu0 %895
  %897 = vrot.lane.b32.xlu0 %v28, 83
  %v898 = vpop.permute.xlu0 %897
  %899 = vrot.lane.b32.xlu0 %v29, 83
  %v900 = vpop.permute.xlu0 %899
  %901 = vrot.lane.b32.xlu0 %v30, 83
  %v902 = vpop.permute.xlu0 %901
  %903 = vrot.lane.b32.xlu0 %v31, 83
  %v904 = vpop.permute.xlu0 %903
  %905 = vrot.lane.b32.xlu0 %v32, 83
  %v906 = vpop.permute.xlu0 %905
  %907 = vrot.lane.b32.xlu0 %v33, 83
  %v908 = vpop.permute.xlu0 %907
  %909 = vrot.lane.b32.xlu0 %v34, 83
  %v910 = vpop.permute.xlu0 %909
  %911 = vrot.lane.b32.xlu0 %v35, 83
  %v912 = vpop.permute.xlu0 %911
  %913 = vrot.lane.b32.xlu0 %v36, 83
  %v914 = vpop.permute.xlu0 %913
  %915 = vrot.lane.b32.xlu0 %v37, 83
  %v916 = vpop.permute.xlu0 %915
  %917 = vrot.lane.b32.xlu0 %v38, 83
  %v918 = vpop.permute.xlu0 %917
  %919 = vrot.lane.b32.xlu0 %v39, 83
  %v920 = vpop.permute.xlu0 %919
  %v937 = vsel %vm40, %v890, 0.0
  %938 = vadd.xlane.f32.xlu0 %v937
  %v939 = vpop.xlane.xlu0 %938
  %v940 = vsel %vm40, %v892, 0.0
  %941 = vadd.xlane.f32.xlu0 %v940
  %v942 = vpop.xlane.xlu0 %941
  %v943 = vsel %vm40, %v894, 0.0
  %944 = vadd.xlane.f32.xlu0 %v943
  %v945 = vpop.xlane.xlu0 %944
  %v946 = vsel %vm40, %v896, 0.0
  %947 = vadd.xlane.f32.xlu0 %v946
  %v948 = vpop.xlane.xlu0 %947
  %v949 = vsel %vm40, %v898, 0.0
  %950 = vadd.xlane.f32.xlu0 %v949
  %v951 = vpop.xlane.xlu0 %950
  %v952 = vsel %vm40, %v900, 0.0
  %953 = vadd.xlane.f32.xlu0 %v952
  %v954 = vpop.xlane.xlu0 %953
  %v955 = vsel %vm40, %v902, 0.0
  %956 = vadd.xlane.f32.xlu0 %v955
  %v957 = vpop.xlane.xlu0 %956
  %v958 = vsel %vm40, %v904, 0.0
  %959 = vadd.xlane.f32.xlu0 %v958
  %v960 = vpop.xlane.xlu0 %959
  %v961 = vsel %vm40, %v906, 0.0
  %962 = vadd.xlane.f32.xlu0 %v961
  %v963 = vpop.xlane.xlu0 %962
  %v964 = vsel %vm40, %v908, 0.0
  %965 = vadd.xlane.f32.xlu0 %v964
  %v966 = vpop.xlane.xlu0 %965
  %v967 = vsel %vm40, %v910, 0.0
  %968 = vadd.xlane.f32.xlu0 %v967
  %v969 = vpop.xlane.xlu0 %968
  %v970 = vsel %vm40, %v912, 0.0
  %971 = vadd.xlane.f32.xlu0 %v970
  %v972 = vpop.xlane.xlu0 %971
  %v973 = vsel %vm40, %v914, 0.0
  %974 = vadd.xlane.f32.xlu0 %v973
  %v975 = vpop.xlane.xlu0 %974
  %v976 = vsel %vm40, %v916, 0.0
  %977 = vadd.xlane.f32.xlu0 %v976
  %v978 = vpop.xlane.xlu0 %977
  %v979 = vsel %vm40, %v918, 0.0
  %980 = vadd.xlane.f32.xlu0 %v979
  %v981 = vpop.xlane.xlu0 %980
  %v982 = vsel %vm40, %v920, 0.0
  %983 = vadd.xlane.f32.xlu0 %v982
  %v984 = vpop.xlane.xlu0 %983
  %v985 = vadd.f32 %v809, %v939
  %v986 = vadd.f32 %v810, %v942
  %v987 = vadd.f32 %v811, %v945
  %v988 = vadd.f32 %v812, %v948
  %v989 = vadd.f32 %v813, %v951
  %v990 = vadd.f32 %v814, %v954
  %v991 = vadd.f32 %v815, %v957
  %v992 = vadd.f32 %v816, %v960
  %v993 = vadd.f32 %v817, %v963
  %v994 = vadd.f32 %v818, %v966
  %v995 = vadd.f32 %v819, %v969
  %v996 = vadd.f32 %v820, %v972
  %v997 = vadd.f32 %v821, %v975
  %v998 = vadd.f32 %v822, %v978
  %v999 = vadd.f32 %v823, %v981
  %v1000 = vadd.f32 %v824, %v984
  %1001 = vrot.lane.b32.xlu0 %v8, 74
  %v1002 = vpop.permute.xlu0 %1001
  %1003 = vrot.lane.b32.xlu0 %v9, 74
  %v1004 = vpop.permute.xlu0 %1003
  %1005 = vrot.lane.b32.xlu0 %v10, 74
  %v1006 = vpop.permute.xlu0 %1005
  %1007 = vrot.lane.b32.xlu0 %v11, 74
  %v1008 = vpop.permute.xlu0 %1007
  %1009 = vrot.lane.b32.xlu0 %v12, 74
  %v1010 = vpop.permute.xlu0 %1009
  %1011 = vrot.lane.b32.xlu0 %v13, 74
  %v1012 = vpop.permute.xlu0 %1011
  %1013 = vrot.lane.b32.xlu0 %v14, 74
  %v1014 = vpop.permute.xlu0 %1013
  %1015 = vrot.lane.b32.xlu0 %v15, 74
  %v1016 = vpop.permute.xlu0 %1015
  %1017 = vrot.lane.b32.xlu0 %v16, 74
  %v1018 = vpop.permute.xlu0 %1017
  %1019 = vrot.lane.b32.xlu0 %v17, 74
  %v1020 = vpop.permute.xlu0 %1019
  %1021 = vrot.lane.b32.xlu0 %v18, 74
  %v1022 = vpop.permute.xlu0 %1021
  %1023 = vrot.lane.b32.xlu0 %v19, 74
  %v1024 = vpop.permute.xlu0 %1023
  %1025 = vrot.lane.b32.xlu0 %v20, 74
  %v1026 = vpop.permute.xlu0 %1025
  %1027 = vrot.lane.b32.xlu0 %v21, 74
  %v1028 = vpop.permute.xlu0 %1027
  %1029 = vrot.lane.b32.xlu0 %v22, 74
  %v1030 = vpop.permute.xlu0 %1029
  %1031 = vrot.lane.b32.xlu0 %v23, 74
  %v1032 = vpop.permute.xlu0 %1031
  %v1049 = vadd.f32 %v873, %v1002
  %v1050 = vadd.f32 %v874, %v1004
  %v1051 = vadd.f32 %v875, %v1006
  %v1052 = vadd.f32 %v876, %v1008
  %v1053 = vadd.f32 %v877, %v1010
  %v1054 = vadd.f32 %v878, %v1012
  %v1055 = vadd.f32 %v879, %v1014
  %v1056 = vadd.f32 %v880, %v1016
  %v1057 = vadd.f32 %v881, %v1018
  %v1058 = vadd.f32 %v882, %v1020
  %v1059 = vadd.f32 %v883, %v1022
  %v1060 = vadd.f32 %v884, %v1024
  %v1061 = vadd.f32 %v885, %v1026
  %v1062 = vadd.f32 %v886, %v1028
  %v1063 = vadd.f32 %v887, %v1030
  %v1064 = vadd.f32 %v888, %v1032
  %1065 = vrot.lane.b32.xlu0 %v24, 74
  %v1066 = vpop.permute.xlu0 %1065
  %1067 = vrot.lane.b32.xlu0 %v25, 74
  %v1068 = vpop.permute.xlu0 %1067
  %1069 = vrot.lane.b32.xlu0 %v26, 74
  %v1070 = vpop.permute.xlu0 %1069
  %1071 = vrot.lane.b32.xlu0 %v27, 74
  %v1072 = vpop.permute.xlu0 %1071
  %1073 = vrot.lane.b32.xlu0 %v28, 74
  %v1074 = vpop.permute.xlu0 %1073
  %1075 = vrot.lane.b32.xlu0 %v29, 74
  %v1076 = vpop.permute.xlu0 %1075
  %1077 = vrot.lane.b32.xlu0 %v30, 74
  %v1078 = vpop.permute.xlu0 %1077
  %1079 = vrot.lane.b32.xlu0 %v31, 74
  %v1080 = vpop.permute.xlu0 %1079
  %1081 = vrot.lane.b32.xlu0 %v32, 74
  %v1082 = vpop.permute.xlu0 %1081
  %1083 = vrot.lane.b32.xlu0 %v33, 74
  %v1084 = vpop.permute.xlu0 %1083
  %1085 = vrot.lane.b32.xlu0 %v34, 74
  %v1086 = vpop.permute.xlu0 %1085
  %1087 = vrot.lane.b32.xlu0 %v35, 74
  %v1088 = vpop.permute.xlu0 %1087
  %1089 = vrot.lane.b32.xlu0 %v36, 74
  %v1090 = vpop.permute.xlu0 %1089
  %1091 = vrot.lane.b32.xlu0 %v37, 74
  %v1092 = vpop.permute.xlu0 %1091
  %1093 = vrot.lane.b32.xlu0 %v38, 74
  %v1094 = vpop.permute.xlu0 %1093
  %1095 = vrot.lane.b32.xlu0 %v39, 74
  %v1096 = vpop.permute.xlu0 %1095
  %v1113 = vsel %vm40, %v1066, 0.0
  %1114 = vadd.xlane.f32.xlu0 %v1113
  %v1115 = vpop.xlane.xlu0 %1114
  %v1116 = vsel %vm40, %v1068, 0.0
  %1117 = vadd.xlane.f32.xlu0 %v1116
  %v1118 = vpop.xlane.xlu0 %1117
  %v1119 = vsel %vm40, %v1070, 0.0
  %1120 = vadd.xlane.f32.xlu0 %v1119
  %v1121 = vpop.xlane.xlu0 %1120
  %v1122 = vsel %vm40, %v1072, 0.0
  %1123 = vadd.xlane.f32.xlu0 %v1122
  %v1124 = vpop.xlane.xlu0 %1123
  %v1125 = vsel %vm40, %v1074, 0.0
  %1126 = vadd.xlane.f32.xlu0 %v1125
  %v1127 = vpop.xlane.xlu0 %1126
  %v1128 = vsel %vm40, %v1076, 0.0
  %1129 = vadd.xlane.f32.xlu0 %v1128
  %v1130 = vpop.xlane.xlu0 %1129
  %v1131 = vsel %vm40, %v1078, 0.0
  %1132 = vadd.xlane.f32.xlu0 %v1131
  %v1133 = vpop.xlane.xlu0 %1132
  %v1134 = vsel %vm40, %v1080, 0.0
  %1135 = vadd.xlane.f32.xlu0 %v1134
  %v1136 = vpop.xlane.xlu0 %1135
  %v1137 = vsel %vm40, %v1082, 0.0
  %1138 = vadd.xlane.f32.xlu0 %v1137
  %v1139 = vpop.xlane.xlu0 %1138
  %v1140 = vsel %vm40, %v1084, 0.0
  %1141 = vadd.xlane.f32.xlu0 %v1140
  %v1142 = vpop.xlane.xlu0 %1141
  %v1143 = vsel %vm40, %v1086, 0.0
  %1144 = vadd.xlane.f32.xlu0 %v1143
  %v1145 = vpop.xlane.xlu0 %1144
  %v1146 = vsel %vm40, %v1088, 0.0
  %1147 = vadd.xlane.f32.xlu0 %v1146
  %v1148 = vpop.xlane.xlu0 %1147
  %v1149 = vsel %vm40, %v1090, 0.0
  %1150 = vadd.xlane.f32.xlu0 %v1149
  %v1151 = vpop.xlane.xlu0 %1150
  %v1152 = vsel %vm40, %v1092, 0.0
  %1153 = vadd.xlane.f32.xlu0 %v1152
  %v1154 = vpop.xlane.xlu0 %1153
  %v1155 = vsel %vm40, %v1094, 0.0
  %1156 = vadd.xlane.f32.xlu0 %v1155
  %v1157 = vpop.xlane.xlu0 %1156
  %v1158 = vsel %vm40, %v1096, 0.0
  %1159 = vadd.xlane.f32.xlu0 %v1158
  %v1160 = vpop.xlane.xlu0 %1159
  %v1161 = vadd.f32 %v985, %v1115
  %v1162 = vadd.f32 %v986, %v1118
  %v1163 = vadd.f32 %v987, %v1121
  %v1164 = vadd.f32 %v988, %v1124
  %v1165 = vadd.f32 %v989, %v1127
  %v1166 = vadd.f32 %v990, %v1130
  %v1167 = vadd.f32 %v991, %v1133
  %v1168 = vadd.f32 %v992, %v1136
  %v1169 = vadd.f32 %v993, %v1139
  %v1170 = vadd.f32 %v994, %v1142
  %v1171 = vadd.f32 %v995, %v1145
  %v1172 = vadd.f32 %v996, %v1148
  %v1173 = vadd.f32 %v997, %v1151
  %v1174 = vadd.f32 %v998, %v1154
  %v1175 = vadd.f32 %v999, %v1157
  %v1176 = vadd.f32 %v1000, %v1160
  %1177 = vrot.lane.b32.xlu0 %v8, 65
  %v1178 = vpop.permute.xlu0 %1177
  %1179 = vrot.lane.b32.xlu0 %v9, 65
  %v1180 = vpop.permute.xlu0 %1179
  %1181 = vrot.lane.b32.xlu0 %v10, 65
  %v1182 = vpop.permute.xlu0 %1181
  %1183 = vrot.lane.b32.xlu0 %v11, 65
  %v1184 = vpop.permute.xlu0 %1183
  %1185 = vrot.lane.b32.xlu0 %v12, 65
  %v1186 = vpop.permute.xlu0 %1185
  %1187 = vrot.lane.b32.xlu0 %v13, 65
  %v1188 = vpop.permute.xlu0 %1187
  %1189 = vrot.lane.b32.xlu0 %v14, 65
  %v1190 = vpop.permute.xlu0 %1189
  %1191 = vrot.lane.b32.xlu0 %v15, 65
  %v1192 = vpop.permute.xlu0 %1191
  %1193 = vrot.lane.b32.xlu0 %v16, 65
  %v1194 = vpop.permute.xlu0 %1193
  %1195 = vrot.lane.b32.xlu0 %v17, 65
  %v1196 = vpop.permute.xlu0 %1195
  %1197 = vrot.lane.b32.xlu0 %v18, 65
  %v1198 = vpop.permute.xlu0 %1197
  %1199 = vrot.lane.b32.xlu0 %v19, 65
  %v1200 = vpop.permute.xlu0 %1199
  %1201 = vrot.lane.b32.xlu0 %v20, 65
  %v1202 = vpop.permute.xlu0 %1201
  %1203 = vrot.lane.b32.xlu0 %v21, 65
  %v1204 = vpop.permute.xlu0 %1203
  %1205 = vrot.lane.b32.xlu0 %v22, 65
  %v1206 = vpop.permute.xlu0 %1205
  %1207 = vrot.lane.b32.xlu0 %v23, 65
  %v1208 = vpop.permute.xlu0 %1207
  %v1225 = vadd.f32 %v1049, %v1178
  %v1226 = vadd.f32 %v1050, %v1180
  %v1227 = vadd.f32 %v1051, %v1182
  %v1228 = vadd.f32 %v1052, %v1184
  %v1229 = vadd.f32 %v1053, %v1186
  %v1230 = vadd.f32 %v1054, %v1188
  %v1231 = vadd.f32 %v1055, %v1190
  %v1232 = vadd.f32 %v1056, %v1192
  %v1233 = vadd.f32 %v1057, %v1194
  %v1234 = vadd.f32 %v1058, %v1196
  %v1235 = vadd.f32 %v1059, %v1198
  %v1236 = vadd.f32 %v1060, %v1200
  %v1237 = vadd.f32 %v1061, %v1202
  %v1238 = vadd.f32 %v1062, %v1204
  %v1239 = vadd.f32 %v1063, %v1206
  %v1240 = vadd.f32 %v1064, %v1208
  %1241 = vrot.lane.b32.xlu0 %v24, 65
  %v1242 = vpop.permute.xlu0 %1241
  %1243 = vrot.lane.b32.xlu0 %v25, 65
  %v1244 = vpop.permute.xlu0 %1243
  %1245 = vrot.lane.b32.xlu0 %v26, 65
  %v1246 = vpop.permute.xlu0 %1245
  %1247 = vrot.lane.b32.xlu0 %v27, 65
  %v1248 = vpop.permute.xlu0 %1247
  %1249 = vrot.lane.b32.xlu0 %v28, 65
  %v1250 = vpop.permute.xlu0 %1249
  %1251 = vrot.lane.b32.xlu0 %v29, 65
  %v1252 = vpop.permute.xlu0 %1251
  %1253 = vrot.lane.b32.xlu0 %v30, 65
  %v1254 = vpop.permute.xlu0 %1253
  %1255 = vrot.lane.b32.xlu0 %v31, 65
  %v1256 = vpop.permute.xlu0 %1255
  %1257 = vrot.lane.b32.xlu0 %v32, 65
  %v1258 = vpop.permute.xlu0 %1257
  %1259 = vrot.lane.b32.xlu0 %v33, 65
  %v1260 = vpop.permute.xlu0 %1259
  %1261 = vrot.lane.b32.xlu0 %v34, 65
  %v1262 = vpop.permute.xlu0 %1261
  %1263 = vrot.lane.b32.xlu0 %v35, 65
  %v1264 = vpop.permute.xlu0 %1263
  %1265 = vrot.lane.b32.xlu0 %v36, 65
  %v1266 = vpop.permute.xlu0 %1265
  %1267 = vrot.lane.b32.xlu0 %v37, 65
  %v1268 = vpop.permute.xlu0 %1267
  %1269 = vrot.lane.b32.xlu0 %v38, 65
  %v1270 = vpop.permute.xlu0 %1269
  %1271 = vrot.lane.b32.xlu0 %v39, 65
  %v1272 = vpop.permute.xlu0 %1271
  %v1289 = vsel %vm40, %v1242, 0.0
  %1290 = vadd.xlane.f32.xlu0 %v1289
  %v1291 = vpop.xlane.xlu0 %1290
  %v1292 = vsel %vm40, %v1244, 0.0
  %1293 = vadd.xlane.f32.xlu0 %v1292
  %v1294 = vpop.xlane.xlu0 %1293
  %v1295 = vsel %vm40, %v1246, 0.0
  %1296 = vadd.xlane.f32.xlu0 %v1295
  %v1297 = vpop.xlane.xlu0 %1296
  %v1298 = vsel %vm40, %v1248, 0.0
  %1299 = vadd.xlane.f32.xlu0 %v1298
  %v1300 = vpop.xlane.xlu0 %1299
  %v1301 = vsel %vm40, %v1250, 0.0
  %1302 = vadd.xlane.f32.xlu0 %v1301
  %v1303 = vpop.xlane.xlu0 %1302
  %v1304 = vsel %vm40, %v1252, 0.0
  %1305 = vadd.xlane.f32.xlu0 %v1304
  %v1306 = vpop.xlane.xlu0 %1305
  %v1307 = vsel %vm40, %v1254, 0.0
  %1308 = vadd.xlane.f32.xlu0 %v1307
  %v1309 = vpop.xlane.xlu0 %1308
  %v1310 = vsel %vm40, %v1256, 0.0
  %1311 = vadd.xlane.f32.xlu0 %v1310
  %v1312 = vpop.xlane.xlu0 %1311
  %v1313 = vsel %vm40, %v1258, 0.0
  %1314 = vadd.xlane.f32.xlu0 %v1313
  %v1315 = vpop.xlane.xlu0 %1314
  %v1316 = vsel %vm40, %v1260, 0.0
  %1317 = vadd.xlane.f32.xlu0 %v1316
  %v1318 = vpop.xlane.xlu0 %1317
  %v1319 = vsel %vm40, %v1262, 0.0
  %1320 = vadd.xlane.f32.xlu0 %v1319
  %v1321 = vpop.xlane.xlu0 %1320
  %v1322 = vsel %vm40, %v1264, 0.0
  %1323 = vadd.xlane.f32.xlu0 %v1322
  %v1324 = vpop.xlane.xlu0 %1323
  %v1325 = vsel %vm40, %v1266, 0.0
  %1326 = vadd.xlane.f32.xlu0 %v1325
  %v1327 = vpop.xlane.xlu0 %1326
  %v1328 = vsel %vm40, %v1268, 0.0
  %1329 = vadd.xlane.f32.xlu0 %v1328
  %v1330 = vpop.xlane.xlu0 %1329
  %v1331 = vsel %vm40, %v1270, 0.0
  %1332 = vadd.xlane.f32.xlu0 %v1331
  %v1333 = vpop.xlane.xlu0 %1332
  %v1334 = vsel %vm40, %v1272, 0.0
  %1335 = vadd.xlane.f32.xlu0 %v1334
  %v1336 = vpop.xlane.xlu0 %1335
  %v1337 = vadd.f32 %v1161, %v1291
  %v1338 = vadd.f32 %v1162, %v1294
  %v1339 = vadd.f32 %v1163, %v1297
  %v1340 = vadd.f32 %v1164, %v1300
  %v1341 = vadd.f32 %v1165, %v1303
  %v1342 = vadd.f32 %v1166, %v1306
  %v1343 = vadd.f32 %v1167, %v1309
  %v1344 = vadd.f32 %v1168, %v1312
  %v1345 = vadd.f32 %v1169, %v1315
  %v1346 = vadd.f32 %v1170, %v1318
  %v1347 = vadd.f32 %v1171, %v1321
  %v1348 = vadd.f32 %v1172, %v1324
  %v1349 = vadd.f32 %v1173, %v1327
  %v1350 = vadd.f32 %v1174, %v1330
  %v1351 = vadd.f32 %v1175, %v1333
  %v1352 = vadd.f32 %v1176, %v1336
  %v1353 = vmul.f32 %v1225, %v1225
  %v1354 = vmul.f32 %v1226, %v1226
  %v1355 = vmul.f32 %v1227, %v1227
  %v1356 = vmul.f32 %v1228, %v1228
  %v1357 = vmul.f32 %v1229, %v1229
  %v1358 = vmul.f32 %v1230, %v1230
  %v1359 = vmul.f32 %v1231, %v1231
  %v1360 = vmul.f32 %v1232, %v1232
  %v1361 = vmul.f32 %v1233, %v1233
  %v1362 = vmul.f32 %v1234, %v1234
  %v1363 = vmul.f32 %v1235, %v1235
  %v1364 = vmul.f32 %v1236, %v1236
  %v1365 = vmul.f32 %v1237, %v1237
  %v1366 = vmul.f32 %v1238, %v1238
  %v1367 = vmul.f32 %v1239, %v1239
  %v1368 = vmul.f32 %v1240, %v1240
  %v1369 = vsel %vm40, %v1353, 0.0
  %1370 = vadd.xlane.f32.xlu0 %v1369
  %v1371 = vpop.xlane.xlu0 %1370
  %v1372 = vsel %vm40, %v1354, 0.0
  %1373 = vadd.xlane.f32.xlu0 %v1372
  %v1374 = vpop.xlane.xlu0 %1373
  %v1375 = vsel %vm40, %v1355, 0.0
  %1376 = vadd.xlane.f32.xlu0 %v1375
  %v1377 = vpop.xlane.xlu0 %1376
  %v1378 = vsel %vm40, %v1356, 0.0
  %1379 = vadd.xlane.f32.xlu0 %v1378
  %v1380 = vpop.xlane.xlu0 %1379
  %v1381 = vsel %vm40, %v1357, 0.0
  %1382 = vadd.xlane.f32.xlu0 %v1381
  %v1383 = vpop.xlane.xlu0 %1382
  %v1384 = vsel %vm40, %v1358, 0.0
  %1385 = vadd.xlane.f32.xlu0 %v1384
  %v1386 = vpop.xlane.xlu0 %1385
  %v1387 = vsel %vm40, %v1359, 0.0
  %1388 = vadd.xlane.f32.xlu0 %v1387
  %v1389 = vpop.xlane.xlu0 %1388
  %v1390 = vsel %vm40, %v1360, 0.0
  %1391 = vadd.xlane.f32.xlu0 %v1390
  %v1392 = vpop.xlane.xlu0 %1391
  %v1393 = vsel %vm40, %v1361, 0.0
  %1394 = vadd.xlane.f32.xlu0 %v1393
  %v1395 = vpop.xlane.xlu0 %1394
  %v1396 = vsel %vm40, %v1362, 0.0
  %1397 = vadd.xlane.f32.xlu0 %v1396
  %v1398 = vpop.xlane.xlu0 %1397
  %v1399 = vsel %vm40, %v1363, 0.0
  %1400 = vadd.xlane.f32.xlu0 %v1399
  %v1401 = vpop.xlane.xlu0 %1400
  %v1402 = vsel %vm40, %v1364, 0.0
  %1403 = vadd.xlane.f32.xlu0 %v1402
  %v1404 = vpop.xlane.xlu0 %1403
  %v1405 = vsel %vm40, %v1365, 0.0
  %1406 = vadd.xlane.f32.xlu0 %v1405
  %v1407 = vpop.xlane.xlu0 %1406
  %v1408 = vsel %vm40, %v1366, 0.0
  %1409 = vadd.xlane.f32.xlu0 %v1408
  %v1410 = vpop.xlane.xlu0 %1409
  %v1411 = vsel %vm40, %v1367, 0.0
  %1412 = vadd.xlane.f32.xlu0 %v1411
  %v1413 = vpop.xlane.xlu0 %1412
  %v1414 = vsel %vm40, %v1368, 0.0
  %1415 = vadd.xlane.f32.xlu0 %v1414
  %v1416 = vpop.xlane.xlu0 %1415
  %v1417 = vsub.f32 %v1371, %v1337
  %v1418 = vsub.f32 %v1374, %v1338
  %v1419 = vsub.f32 %v1377, %v1339
  %v1420 = vsub.f32 %v1380, %v1340
  %v1421 = vsub.f32 %v1383, %v1341
  %v1422 = vsub.f32 %v1386, %v1342
  %v1423 = vsub.f32 %v1389, %v1343
  %v1424 = vsub.f32 %v1392, %v1344
  %v1425 = vsub.f32 %v1395, %v1345
  %v1426 = vsub.f32 %v1398, %v1346
  %v1427 = vsub.f32 %v1401, %v1347
  %v1428 = vsub.f32 %v1404, %v1348
  %v1429 = vsub.f32 %v1407, %v1349
  %v1430 = vsub.f32 %v1410, %v1350
  %v1431 = vsub.f32 %v1413, %v1351
  %v1432 = vsub.f32 %v1416, %v1352
  %v1433 = vmul.f32 %v1417, 0.5
  %v1434 = vmul.f32 %v1418, 0.5
  %v1435 = vmul.f32 %v1419, 0.5
  %v1436 = vmul.f32 %v1420, 0.5
  %v1437 = vmul.f32 %v1421, 0.5
  %v1438 = vmul.f32 %v1422, 0.5
  %v1439 = vmul.f32 %v1423, 0.5
  %v1440 = vmul.f32 %v1424, 0.5
  %v1441 = vmul.f32 %v1425, 0.5
  %v1442 = vmul.f32 %v1426, 0.5
  %v1443 = vmul.f32 %v1427, 0.5
  %v1444 = vmul.f32 %v1428, 0.5
  %v1445 = vmul.f32 %v1429, 0.5
  %v1446 = vmul.f32 %v1430, 0.5
  %v1447 = vmul.f32 %v1431, 0.5
  %v1448 = vmul.f32 %v1432, 0.5
  %v1449 = vadd.f32 %v1225, %v1433
  %v1450 = vadd.f32 %v1226, %v1434
  %v1451 = vadd.f32 %v1227, %v1435
  %v1452 = vadd.f32 %v1228, %v1436
  %v1453 = vadd.f32 %v1229, %v1437
  %v1454 = vadd.f32 %v1230, %v1438
  %v1455 = vadd.f32 %v1231, %v1439
  %v1456 = vadd.f32 %v1232, %v1440
  %v1457 = vadd.f32 %v1233, %v1441
  %v1458 = vadd.f32 %v1234, %v1442
  %v1459 = vadd.f32 %v1235, %v1443
  %v1460 = vadd.f32 %v1236, %v1444
  %v1461 = vadd.f32 %v1237, %v1445
  %v1462 = vadd.f32 %v1238, %v1446
  %v1463 = vadd.f32 %v1239, %v1447
  %v1464 = vadd.f32 %v1240, %v1448
  %1481 = vrot.lane.b32.xlu0 %v1449, 120
  %v1482 = vpop.permute.xlu0 %1481
  %1483 = vrot.lane.b32.xlu0 %v1450, 120
  %v1484 = vpop.permute.xlu0 %1483
  %1485 = vrot.lane.b32.xlu0 %v1451, 120
  %v1486 = vpop.permute.xlu0 %1485
  %1487 = vrot.lane.b32.xlu0 %v1452, 120
  %v1488 = vpop.permute.xlu0 %1487
  %1489 = vrot.lane.b32.xlu0 %v1453, 120
  %v1490 = vpop.permute.xlu0 %1489
  %1491 = vrot.lane.b32.xlu0 %v1454, 120
  %v1492 = vpop.permute.xlu0 %1491
  %1493 = vrot.lane.b32.xlu0 %v1455, 120
  %v1494 = vpop.permute.xlu0 %1493
  %1495 = vrot.lane.b32.xlu0 %v1456, 120
  %v1496 = vpop.permute.xlu0 %1495
  %1497 = vrot.lane.b32.xlu0 %v1457, 120
  %v1498 = vpop.permute.xlu0 %1497
  %1499 = vrot.lane.b32.xlu0 %v1458, 120
  %v1500 = vpop.permute.xlu0 %1499
  %1501 = vrot.lane.b32.xlu0 %v1459, 120
  %v1502 = vpop.permute.xlu0 %1501
  %1503 = vrot.lane.b32.xlu0 %v1460, 120
  %v1504 = vpop.permute.xlu0 %1503
  %1505 = vrot.lane.b32.xlu0 %v1461, 120
  %v1506 = vpop.permute.xlu0 %1505
  %1507 = vrot.lane.b32.xlu0 %v1462, 120
  %v1508 = vpop.permute.xlu0 %1507
  %1509 = vrot.lane.b32.xlu0 %v1463, 120
  %v1510 = vpop.permute.xlu0 %1509
  %1511 = vrot.lane.b32.xlu0 %v1464, 120
  %v1512 = vpop.permute.xlu0 %1511
  %vm1529 = vcmask 7168
  %1530 = vst.msk [vmem:[%s1] sm:$0xff] %vm1529, %v1482
  %1531 = vst.msk [vmem:[%s1 + $0x8] sm:$0xff] %vm1529, %v1484
  %1532 = vst.msk [vmem:[%s1 + $0x10] sm:$0xff] %vm1529, %v1486
  %1533 = vst.msk [vmem:[%s1 + $0x18] sm:$0xff] %vm1529, %v1488
  %1534 = vst.msk [vmem:[%s1 + $0x20] sm:$0xff] %vm1529, %v1490
  %1535 = vst.msk [vmem:[%s1 + $0x28] sm:$0xff] %vm1529, %v1492
  %1536 = vst.msk [vmem:[%s1 + $0x30] sm:$0xff] %vm1529, %v1494
  %1537 = vst.msk [vmem:[%s1 + $0x38] sm:$0xff] %vm1529, %v1496
  %1538 = vst.msk [vmem:[%s1 + $0x40] sm:$0xff] %vm1529, %v1498
  %1539 = vst.msk [vmem:[%s1 + $0x48] sm:$0xff] %vm1529, %v1500
  %1540 = vst.msk [vmem:[%s1 + $0x50] sm:$0xff] %vm1529, %v1502
  %1541 = vst.msk [vmem:[%s1 + $0x58] sm:$0xff] %vm1529, %v1504
  %1542 = vst.msk [vmem:[%s1 + $0x60] sm:$0xff] %vm1529, %v1506
  %1543 = vst.msk [vmem:[%s1 + $0x68] sm:$0xff] %vm1529, %v1508
  %1544 = vst.msk [vmem:[%s1 + $0x70] sm:$0xff] %vm1529, %v1510
  %1545 = vst.msk [vmem:[%s1 + $0x78] sm:$0xff] %vm1529, %v1512
  // Predicated region
  $region6: #{fm_forward.1} parent=0 // pred_check
    _
  $region7: #{fm_forward.1} parent=0 // pred_check_branch
    %1547 = sbr.rel (0) target = $region9
  $region8: #{fm_forward.1} parent=0 // pred_region
    _
  $region9: #{fm_forward.1} parent=0 // pred_fallthru
    _
  // Predicated region
  $region10: #{fm_forward.1} parent=0 // pred_check
    _
  $region11: #{fm_forward.1} parent=0 // pred_check_branch
    %1549 = sbr.rel (0) target = $region13
  $region12: #{fm_forward.1} parent=0 // pred_region
    _
  $region13: #{fm_forward.1} parent=0 // pred_fallthru
    _

</llo_original>
